<compile_context>
chip_gen: v6e
topology: v6e:2x2x1
jax: 0.10.0
libtpu: 0.0.40
codegen_flags: <defaults>
</compile_context>

<pallas_src>
import functools

import jax
import jax.numpy as jnp
from jax.experimental import pallas as pl
from jax.experimental.pallas import tpu as pltpu


def _value_net_kernel(x_ref, w1_ref, b1_ref, w2_ref, b2_ref, o_ref):
    # fc1 on the MXU: (H, S) @ (S, tb) -> (H, tb), f32 accumulation.
    h = jnp.dot(w1_ref[...], x_ref[...], preferred_element_type=jnp.float32)
    # bias (broadcast along lanes) + ReLU on the VPU, all f32.
    h = jnp.maximum(h + b1_ref[...], 0.0)
    # fc2: weighted cross-sublane reduce (VPU mul + XLU reduce) -> (1, tb),
    # already lane-dense; no relayout before the store.
    v = jnp.sum(h * w2_ref[...], axis=0, keepdims=True) + b2_ref[0, 0]
    o_ref[...] = v.astype(o_ref.dtype)


def _round_up(n, m):
    return ((n + m - 1) // m) * m


@functools.partial(jax.jit, static_argnames=("tile_b",))
def value_net_forward(x, w1, b1, w2, b2, *, tile_b=16384):
    """Forward pass of ValueNet.

    x : (B, state_dim)        -- activations (PyTorch batch-major layout)
    w1: (hidden, state_dim)   -- fc1.weight (PyTorch layout)
    b1: (hidden,)             -- fc1.bias
    w2: (1, hidden)           -- fc2.weight
    b2: (1,)                  -- fc2.bias
    Returns (B, 1) float32:  fc2(relu(fc1(x)))
    """
    B, S = x.shape
    H = w1.shape[0]

    # Balanced lane tile: big enough to amortize per-step overhead, small
    # enough that the ragged last tile is never mostly padding.
    nt = max(1, -(-B // tile_b))                 # target number of tiles
    tb = _round_up(-(-B // nt), 256)             # per-tile lane width (mult of 256)
    nt = max(1, -(-B // tb))                     # actual number of tiles
    B_pad = nt * tb

    # One pass over x: transpose to (S, B) and pad the lane axis (fused by XLA).
    # A producer emitting x already as (S, B_pad) would make this free.
    x_t = jnp.pad(x.T, ((0, 0), (0, B_pad - B)))

    # Tiny, grid-resident parameter layouts (column vectors broadcast over lanes).
    w1_in = w1.astype(x.dtype)                          # (H, S)
    b1_col = b1.reshape(H, 1).astype(jnp.float32)       # (H, 1)
    w2_col = w2.reshape(H, 1).astype(jnp.float32)       # (H, 1)
    b2_s = b2.reshape(1, 1).astype(jnp.float32)         # (1, 1) SMEM scalar

    out = pl.pallas_call(
        _value_net_kernel,
        out_shape=jax.ShapeDtypeStruct((1, B_pad), jnp.float32),
        grid=(nt,),
        in_specs=[
            pl.BlockSpec((S, tb), lambda i: (0, i)),            # x^T tile (streamed)
            pl.BlockSpec((H, S), lambda i: (0, 0)),             # w1 (resident)
            pl.BlockSpec((H, 1), lambda i: (0, 0)),             # b1 column
            pl.BlockSpec((H, 1), lambda i: (0, 0)),             # w2 column
            pl.BlockSpec((1, 1), lambda i: (0, 0),
                         memory_space=pltpu.SMEM),              # b2 scalar
        ],
        out_specs=pl.BlockSpec((1, tb), lambda i: (0, i)),      # lane-dense output
        compiler_params=pltpu.CompilerParams(
            # "parallel" shards the batch axis across TensorCores on v7x and
            # is a no-op on single-TC v5e/v6e.  VMEM use is tiny (<1 MiB) with
            # the lane-dense layout, so no vmem_limit_bytes override needed.
            dimension_semantics=("parallel",),
        ),
    )(x_t, w1_in, b1_col, w2_col, b2_s)

    # Drop lane padding, restore (B, 1).
    return out[0, :B].reshape(B, 1)


def init_value_net_params(key, state_dim, hidden_dim):
    """Synthetic init mirroring PyTorch param shapes:
    fc1.weight (H, S), fc1.bias (H,), fc2.weight (1, H), fc2.bias (1,)."""
    k1, k2, k3, k4 = jax.random.split(key, 4)
    lim1 = 1.0 / jnp.sqrt(jnp.float32(state_dim))
    lim2 = 1.0 / jnp.sqrt(jnp.float32(hidden_dim))
    w1 = jax.random.uniform(k1, (hidden_dim, state_dim), jnp.float32, -lim1, lim1)
    b1 = jax.random.uniform(k2, (hidden_dim,), jnp.float32, -lim1, lim1)
    w2 = jax.random.uniform(k3, (1, hidden_dim), jnp.float32, -lim2, lim2)
    b2 = jax.random.uniform(k4, (1,), jnp.float32, -lim2, lim2)
    return w1, b1, w2, b2


if __name__ == "__main__":
    state_dim, hidden_dim = 4, 32

    key = jax.random.PRNGKey(0)
    kx, kp, kx2 = jax.random.split(key, 3)
    w1, b1, w2, b2 = init_value_net_params(kp, state_dim, hidden_dim)

    def ref_fwd(x):
        return jnp.maximum(x @ w1.T + b1, 0.0) @ w2.T + b2

    # Toy shapes from the module: B=8, state_dim=4, hidden=32 (single tile).
    x_small = jax.random.normal(kx, (8, state_dim), jnp.float32)
    out_small = jax.block_until_ready(value_net_forward(x_small, w1, b1, w2, b2))
    assert out_small.shape == (8, 1)
    assert jnp.allclose(out_small, ref_fwd(x_small), atol=1e-5, rtol=1e-5)

    # Larger ragged batch: multi-tile grid + masked tail (1000 -> 4 x 256 lanes).
    x_big = jax.random.normal(kx2, (1000, state_dim), jnp.float32)
    out_big = jax.block_until_ready(
        value_net_forward(x_big, w1, b1, w2, b2, tile_b=256))
    assert out_big.shape == (1000, 1)
    assert jnp.allclose(out_big, ref_fwd(x_big), atol=1e-5, rtol=1e-5)

    # Default (large-tile) path on the same ragged batch: single balanced tile.
    out_def = jax.block_until_ready(value_net_forward(x_big, w1, b1, w2, b2))
    assert out_def.shape == (1000, 1)
    assert jnp.allclose(out_def, ref_fwd(x_big), atol=1e-5, rtol=1e-5)

    print("KERNEL_OK")
</pallas_src>

<mosaic_0001>
module attributes {stable_mosaic.version = 11 : i64} {
  func.func @_value_net_kernel(%arg0: i32, %arg1: memref<4x256xf32, #tpu.memory_space<vmem>>, %arg2: memref<32x4xf32, #tpu.memory_space<vmem>>, %arg3: memref<32x1xf32, #tpu.memory_space<vmem>>, %arg4: memref<32x1xf32, #tpu.memory_space<vmem>>, %arg5: memref<1x1xf32, #tpu.memory_space<smem>>, %arg6: memref<1x256xf32, #tpu.memory_space<vmem>>) attributes {dimension_semantics = [#tpu.dimension_semantics<parallel>], iteration_bounds = array<i64: 1>, scalar_prefetch = 0 : i64, scratch_operands = 0 : i64, tpu.core_type = #tpu.core_type<tc>, window_params = [{transform_indices = @transform_0, window_bounds = array<i64: 4, 256>}, {pipeline_mode = #tpu.pipeline_mode<synchronous>, transform_indices = @transform_1, window_bounds = array<i64: 32, 4>}, {pipeline_mode = #tpu.pipeline_mode<synchronous>, transform_indices = @transform_2, window_bounds = array<i64: 32, 1>}, {pipeline_mode = #tpu.pipeline_mode<synchronous>, transform_indices = @transform_3, window_bounds = array<i64: 32, 1>}, {transform_indices = @transform_4, window_bounds = array<i64: 1, 1>}, {transform_indices = @transform_5, window_bounds = array<i64: 1, 256>}]} {
    %c0 = arith.constant 0 : index
    %c0_0 = arith.constant 0 : index
    %0 = vector.load %arg2[%c0, %c0_0] : memref<32x4xf32, #tpu.memory_space<vmem>>, vector<32x4xf32>
    %c0_1 = arith.constant 0 : index
    %c0_2 = arith.constant 0 : index
    %1 = vector.load %arg1[%c0_1, %c0_2] : memref<4x256xf32, #tpu.memory_space<vmem>>, vector<4x256xf32>
    %cst = arith.constant dense<0.000000e+00> : vector<32x256xf32>
    %2 = tpu.matmul %0, %1, %cst {dimension_numbers = #tpu.dot_dimension_numbers<[1], [0], [0], [1], [0, 0, 1, 1], [], []>} : vector<32x4xf32>, vector<4x256xf32>, vector<32x256xf32> -> vector<32x256xf32>
    %c0_3 = arith.constant 0 : index
    %c0_4 = arith.constant 0 : index
    %3 = vector.load %arg3[%c0_3, %c0_4] : memref<32x1xf32, #tpu.memory_space<vmem>>, vector<32x1xf32>
    %4 = vector.broadcast %3 : vector<32x1xf32> to vector<32x256xf32>
    %5 = arith.addf %2, %4 : vector<32x256xf32>
    %cst_5 = arith.constant 0.000000e+00 : f32
    %6 = vector.broadcast %cst_5 : f32 to vector<32x256xf32>
    %7 = arith.maximumf %5, %6 : vector<32x256xf32>
    %c0_6 = arith.constant 0 : index
    %c0_7 = arith.constant 0 : index
    %8 = vector.load %arg4[%c0_6, %c0_7] : memref<32x1xf32, #tpu.memory_space<vmem>>, vector<32x1xf32>
    %9 = vector.broadcast %8 : vector<32x1xf32> to vector<32x256xf32>
    %10 = arith.mulf %7, %9 : vector<32x256xf32>
    %cst_8 = arith.constant dense<0.000000e+00> : vector<256xf32>
    %11 = vector.multi_reduction <add>, %10, %cst_8 [0] : vector<32x256xf32> to vector<256xf32>
    %12 = vector.shape_cast %11 : vector<256xf32> to vector<1x256xf32>
    %c0_9 = arith.constant 0 : index
    %c0_10 = arith.constant 0 : index
    %13 = memref.load %arg5[%c0_9, %c0_10] : memref<1x1xf32, #tpu.memory_space<smem>>
    %14 = vector.broadcast %13 : f32 to vector<1x256xf32>
    %15 = arith.addf %12, %14 : vector<1x256xf32>
    %c0_11 = arith.constant 0 : index
    %c0_12 = arith.constant 0 : index
    %16 = vector.load %arg6[%c0_11, %c0_12] : memref<1x256xf32, #tpu.memory_space<vmem>>, vector<1x256xf32>
    tpu.vector_store %arg6[%c0_11, %c0_12], %15 {strides = array<i32>} : memref<1x256xf32, #tpu.memory_space<vmem>>, vector<1x256xf32>,
    return
  }
  func.func @transform_0(%arg0: i32) -> (i32, i32) {
    %c0_i32 = arith.constant 0 : i32
    %c0_i32_0 = arith.constant 0 : i32
    return %c0_i32, %arg0 : i32, i32
  }
  func.func @transform_1(%arg0: i32) -> (i32, i32) {
    %c0_i32 = arith.constant 0 : i32
    %c0_i32_0 = arith.constant 0 : i32
    %c0_i32_1 = arith.constant 0 : i32
    return %c0_i32, %c0_i32_0 : i32, i32
  }
  func.func @transform_2(%arg0: i32) -> (i32, i32) {
    %c0_i32 = arith.constant 0 : i32
    %c0_i32_0 = arith.constant 0 : i32
    %c0_i32_1 = arith.constant 0 : i32
    return %c0_i32, %c0_i32_0 : i32, i32
  }
  func.func @transform_3(%arg0: i32) -> (i32, i32) {
    %c0_i32 = arith.constant 0 : i32
    %c0_i32_0 = arith.constant 0 : i32
    %c0_i32_1 = arith.constant 0 : i32
    return %c0_i32, %c0_i32_0 : i32, i32
  }
  func.func @transform_4(%arg0: i32) -> (i32, i32) {
    %c0_i32 = arith.constant 0 : i32
    %c0_i32_0 = arith.constant 0 : i32
    %c0_i32_1 = arith.constant 0 : i32
    return %c0_i32, %c0_i32_0 : i32, i32
  }
  func.func @transform_5(%arg0: i32) -> (i32, i32) {
    %c0_i32 = arith.constant 0 : i32
    %c0_i32_0 = arith.constant 0 : i32
    return %c0_i32, %arg0 : i32, i32
  }
}

</mosaic_0001>

<llo_original>
// kernel: value_net_forward.1
$region0: #{value_net_forward.1}
  #allocation0 [shape = 'u32[]', space=smem, size = 0x4, offset = 0x4, fixed_abs, tag = 'smem constant byte address 0x4 - core index']
  #allocation1 [shape = 'u32[144,128]{1,0:T(1,128)}', space=vmem, size = 0x12000, scoped, tag = 'internal scratch']
  #allocation2 [shape = 'f32[1,1]{1,0:T(1,128)S(6)}', space=smem, size = 0x200, scoped, tag = 'scoped memory for value_net_forward.1']
  %s0 = inlined_call_operand.vmem [shape: f32[4,256], index: 0, kind: input, shape index: {}]
  %s1 = inlined_call_operand.vmem [shape: f32[32,4], index: 1, kind: input, shape index: {}]
  %s2 = inlined_call_operand.vmem [shape: f32[32,1], index: 2, kind: input, shape index: {}]
  %s3 = inlined_call_operand.vmem [shape: f32[32,1], index: 3, kind: input, shape index: {}]
  %s4 = inlined_call_operand.<no memory space> [shape: f32[1,1], index: 4, kind: input, shape index: {}]
  %s5 = inlined_call_operand.vmem [shape: f32[1,256], index: 5, kind: output, shape index: {}]
  %s6 = sld [smem:[#allocation0]]
  $region30: #{value_net_forward.1} parent=0
    _
  %s8 = ssub.s32 1, %s6
  %s9 = scalar_select 0, %s8, %s6
  %10 = sst [smem:[#allocation2]] %s4
  // Predicated region
  $region2: #{value_net_forward.1} parent=0 // pred_check
    _
  $region3: #{value_net_forward.1} parent=0 // pred_check_branch
    %12 = sbr.rel (0) target = $region5
  $region4: #{value_net_forward.1} parent=0 // pred_region
    _
  $region5: #{value_net_forward.1} parent=0 // pred_fallthru
    _
  // Predicated region
  $region6: #{value_net_forward.1} parent=0 // pred_check
    _
  $region7: #{value_net_forward.1} parent=0 // pred_check_branch
    %14 = sbr.rel (0) target = $region9
  $region8: #{value_net_forward.1} parent=0 // pred_region
    _
  $region9: #{value_net_forward.1} parent=0 // pred_fallthru
    _
  // Predicated region
  $region10: #{value_net_forward.1} parent=0 // pred_check
    _
  $region11: #{value_net_forward.1} parent=0 // pred_check_branch
    %16 = sbr.rel (0) target = $region13
  $region12: #{value_net_forward.1} parent=0 // pred_region
    _
  $region13: #{value_net_forward.1} parent=0 // pred_fallthru
    _
  // Predicated region
  $region14: #{value_net_forward.1} parent=0 // pred_check
    _
  $region15: #{value_net_forward.1} parent=0 // pred_check_branch
    %18 = sbr.rel (0) target = $region17
  $region16: #{value_net_forward.1} parent=0 // pred_region
    _
  $region17: #{value_net_forward.1} parent=0 // pred_fallthru
    _
  // Predicated region
  $region18: #{value_net_forward.1} parent=0 // pred_check
    _
  $region19: #{value_net_forward.1} parent=0 // pred_check_branch
    %20 = sbr.rel (0) target = $region21
  $region20: #{value_net_forward.1} parent=0 // pred_region
    _
  $region21: #{value_net_forward.1} parent=0 // pred_fallthru
    _
  %v21 = vld [vmem:[%s1] sm:$0xff]
  %v22 = vld [vmem:[%s1 + $0x8] sm:$0xff]
  %v23 = vld [vmem:[%s1 + $0x10] sm:$0xff]
  %v24 = vld [vmem:[%s1 + $0x18] sm:$0xff]
  %v25 = vld [vmem:[%s0] sm:$0xff]
  %v26 = vld [vmem:[%s2] sm:$0xff]
  %v27 = vld [vmem:[%s2 + $0x8] sm:$0xff]
  %v28 = vld [vmem:[%s2 + $0x10] sm:$0xff]
  %v29 = vld [vmem:[%s2 + $0x18] sm:$0xff]
  %31 = vset.pattern.permute.xlu0 0
  %32 = vperm.xlu0 %31, %v26
  %v33 = vpop.permute.xlu0 %32
  %36 = vset.pattern.permute.xlu0 0
  %37 = vperm.xlu0 %36, %v27
  %v38 = vpop.permute.xlu0 %37
  %41 = vset.pattern.permute.xlu0 0
  %42 = vperm.xlu0 %41, %v28
  %v43 = vpop.permute.xlu0 %42
  %46 = vset.pattern.permute.xlu0 0
  %47 = vperm.xlu0 %46, %v29
  %v48 = vpop.permute.xlu0 %47
  %v51 = vcombine.high %v25, %v25
  %vm52 = vcmask 31744
  %v54 = vsel %vm52, %v21, 0
  %v57 = vsel %vm52, %v22, 0
  %v60 = vsel %vm52, %v23, 0
  %v63 = vsel %vm52, %v24, 0
  %vm65 = vcmask 1043456
  %v66 = vsel %vm65, %v25, 0
  %v68 = vsel %vm65, %v51, 0
  %70 = vmatprep.subr.mxu0 0.0
  %71 = vmatpush1.msra.mxu0 0.0
  %72 = vmatprep.subr.mxu0 0.0
  %73 = vmatpush1.msra.mxu0 0.0
  %74 = vmatprep.subr.mxu0 0.0
  %75 = vmatpush1.msra.mxu0 0.0
  %76 = vmatprep.subr.mxu0 0.0
  %77 = vmatpush1.msra.mxu0 0.0
  %78 = vmatprep.subr.mxu0 0.0
  %79 = vmatpush1.msra.mxu0 0.0
  %80 = vmatprep.subr.mxu0 0.0
  %81 = vmatpush1.msra.mxu0 0.0
  %82 = vmatprep.subr.mxu0 0.0
  %83 = vmatpush1.msra.mxu0 0.0
  %84 = vmatprep.subr.mxu0 0.0
  %85 = vmatpush1.msra.mxu0 0.0
  %86 = vmatprep.subr.mxu0 0.0
  %87 = vmatpush1.msra.mxu0 0.0
  %88 = vmatprep.subr.mxu0 0.0
  %89 = vmatpush1.msra.mxu0 0.0
  %90 = vmatprep.subr.mxu0 0.0
  %91 = vmatpush1.msra.mxu0 0.0
  %92 = vmatprep.subr.mxu0 0.0
  %93 = vmatpush1.msra.mxu0 0.0
  %94 = vmatprep.subr.mxu0 0.0
  %95 = vmatpush1.msra.mxu0 0.0
  %96 = vmatprep.subr.mxu0 0.0
  %97 = vmatpush1.msra.mxu0 0.0
  %98 = vmatprep.subr.mxu0 0.0
  %99 = vmatpush1.msra.mxu0 0.0
  %100 = vmatprep.subr.mxu0 %v68
  %101 = vmatpush1.msra.mxu0 %v66
  %102 = vmatprep.subr.mxu0 0.0
  %103 = vmatpush2.msra.mxu0 0.0
  %104 = vmatprep.subr.mxu0 0.0
  %105 = vmatpush2.msra.mxu0 0.0
  %106 = vmatprep.subr.mxu0 0.0
  %107 = vmatpush2.msra.mxu0 0.0
  %108 = vmatprep.subr.mxu0 0.0
  %109 = vmatpush2.msra.mxu0 0.0
  %110 = vmatprep.subr.mxu0 0.0
  %111 = vmatpush2.msra.mxu0 0.0
  %112 = vmatprep.subr.mxu0 0.0
  %113 = vmatpush2.msra.mxu0 0.0
  %114 = vmatprep.subr.mxu0 0.0
  %115 = vmatpush2.msra.mxu0 0.0
  %116 = vmatprep.subr.mxu0 0.0
  %117 = vmatpush2.msra.mxu0 0.0
  %118 = vmatprep.subr.mxu0 0.0
  %119 = vmatpush2.msra.mxu0 0.0
  %120 = vmatprep.subr.mxu0 0.0
  %121 = vmatpush2.msra.mxu0 0.0
  %122 = vmatprep.subr.mxu0 0.0
  %123 = vmatpush2.msra.mxu0 0.0
  %124 = vmatprep.subr.mxu0 0.0
  %125 = vmatpush2.msra.mxu0 0.0
  %126 = vmatprep.subr.mxu0 0.0
  %127 = vmatpush2.msra.mxu0 0.0
  %128 = vmatprep.subr.mxu0 0.0
  %129 = vmatpush2.msra.mxu0 0.0
  %130 = vmatprep.subr.mxu0 0.0
  %131 = vmatpush2.msra.mxu0 0.0
  %132 = vmatprep.subr.mxu0 0.0
  %133 = vmatpush2.msra.mxu0 0.0
  %134 = vmatprep.mubr.f32.mxu0 0.0
  %135 = vmatmul.mubr.f32.gmra.mxu0 %v54
  %v136 = vpop.f32.mrf.mxu0
  %v137 = vadd.f32 %v33, %v136
  %v138 = vpop.f32.mrf.mxu0
  %v139 = vadd.f32 %v33, %v138
  %140 = vmatprep.mubr.f32.mxu0 0.0
  %141 = vmatmul.mubr.f32.gmra.mxu0 %v57
  %v142 = vpop.f32.mrf.mxu0
  %v143 = vadd.f32 %v38, %v142
  %v144 = vpop.f32.mrf.mxu0
  %v145 = vadd.f32 %v38, %v144
  %146 = vmatprep.mubr.f32.mxu0 0.0
  %147 = vmatmul.mubr.f32.gmra.mxu0 %v60
  %v148 = vpop.f32.mrf.mxu0
  %v149 = vadd.f32 %v43, %v148
  %v150 = vpop.f32.mrf.mxu0
  %v151 = vadd.f32 %v43, %v150
  %152 = vmatprep.mubr.f32.mxu0 0.0
  %153 = vmatmul.mubr.f32.gmra.mxu0 %v63
  %v154 = vpop.f32.mrf.mxu0
  %v155 = vadd.f32 %v48, %v154
  %v156 = vpop.f32.mrf.mxu0
  %v157 = vadd.f32 %v48, %v156
  %158 = vdwg.mxu0
  %v159 = vmax.f32 %v137, 0.0
  %v160 = vmax.f32 %v139, 0.0
  %v161 = vmax.f32 %v143, 0.0
  %v162 = vmax.f32 %v145, 0.0
  %v163 = vmax.f32 %v149, 0.0
  %v164 = vmax.f32 %v151, 0.0
  %v165 = vmax.f32 %v155, 0.0
  %v166 = vmax.f32 %v157, 0.0
  %v167 = vld [vmem:[%s3] sm:$0xff]
  %v168 = vld [vmem:[%s3 + $0x8] sm:$0xff]
  %v169 = vld [vmem:[%s3 + $0x10] sm:$0xff]
  %v170 = vld [vmem:[%s3 + $0x18] sm:$0xff]
  %172 = vset.pattern.permute.xlu0 0
  %173 = vperm.xlu0 %172, %v167
  %v174 = vpop.permute.xlu0 %173
  %177 = vset.pattern.permute.xlu0 0
  %178 = vperm.xlu0 %177, %v168
  %v179 = vpop.permute.xlu0 %178
  %182 = vset.pattern.permute.xlu0 0
  %183 = vperm.xlu0 %182, %v169
  %v184 = vpop.permute.xlu0 %183
  %187 = vset.pattern.permute.xlu0 0
  %188 = vperm.xlu0 %187, %v170
  %v189 = vpop.permute.xlu0 %188
  %v191 = vmul.f32 %v159, %v174
  %v192 = vmul.f32 %v160, %v174
  %v193 = vmul.f32 %v161, %v179
  %v194 = vmul.f32 %v162, %v179
  %v195 = vmul.f32 %v163, %v184
  %v196 = vmul.f32 %v164, %v184
  %v197 = vmul.f32 %v165, %v189
  %v198 = vmul.f32 %v166, %v189
  %v199 = vadd.f32 %v191, %v193
  %v200 = vadd.f32 %v199, %v195
  %v201 = vadd.f32 %v200, %v197
  %v202 = vrot.slane %v201, 4
  %v203 = vadd.f32 %v201, %v202
  %v204 = vrot.slane %v203, 2
  %v205 = vadd.f32 %v203, %v204
  %v206 = vrot.slane %v205, 1
  %v207 = vadd.f32 %v205, %v206
  %v208 = vadd.f32 %v192, %v194
  %v209 = vadd.f32 %v208, %v196
  %v210 = vadd.f32 %v209, %v198
  %v211 = vrot.slane %v210, 4
  %v212 = vadd.f32 %v210, %v211
  %v213 = vrot.slane %v212, 2
  %v214 = vadd.f32 %v212, %v213
  %v215 = vrot.slane %v214, 1
  %v216 = vadd.f32 %v214, %v215
  %s217 = sld [smem:[#allocation2]]
  %v218 = vstv %s217
  %v219 = vadd.f32 %v207, %v218
  %v220 = vadd.f32 %v216, %v218
  %v223 = vcombine.low %v219, %v220
  %v225 = vunpack.c.l.s4 1966171168
  %v226 = vunpack.c.0.s8 %v225
  %v227 = vlaneseq
  %v228 = vshrl.u32 %v227, 7
  %v229 = vsub.s32 %v226, %v228
  %v230 = vrot.slane %v223, %v229
  %v232 = vunpack.c.l.s4 1966171168
  %v233 = vunpack.c.0.s8 %v232
  %v234 = vlaneseq
  %v235 = vshrl.u32 %v234, 7
  %v236 = vsub.s32 %v233, %v235
  %v237 = vrot.slane %v230, %v236
  %v239 = vlaneseq
  %vm240 = vcmp.ge.s32.totalorder %v239, 0
  %vm241 = vcmp.lt.s32.totalorder %v239, 256
  %vm242 = vmand %vm240, %vm241
  %243 = vst.msk [vmem:[%s5] sm:$0x3] %vm242, %v237
  // Predicated region
  $region22: #{value_net_forward.1} parent=0 // pred_check
    _
  $region23: #{value_net_forward.1} parent=0 // pred_check_branch
    %245 = sbr.rel (0) target = $region25
  $region24: #{value_net_forward.1} parent=0 // pred_region
    _
  $region25: #{value_net_forward.1} parent=0 // pred_fallthru
    _
  // Predicated region
  $region26: #{value_net_forward.1} parent=0 // pred_check
    _
  $region27: #{value_net_forward.1} parent=0 // pred_check_branch
    %247 = sbr.rel (0) target = $region29
  $region28: #{value_net_forward.1} parent=0 // pred_region
    _
  $region29: #{value_net_forward.1} parent=0 // pred_fallthru
    _

</llo_original>
